<compile_context>
chip_gen: v5e
topology: v5e:2x2
jax: 0.10.0
libtpu: 0.0.40
codegen_flags: <defaults>
</compile_context>

<pallas_src>
import jax
import jax.numpy as jnp
from jax import lax
from jax.experimental import pallas as pl
from jax.experimental.pallas import tpu as pltpu

# ----------------------------- static sizes ---------------------------------
H_IN = W_IN = 4
C_IN = 3
C1 = 8                               # conv1 out channels
K1 = 3                               # conv1 kernel
C2 = 16                              # conv2 out channels
H_OUT = W_OUT = H_IN - K1 + 1        # 2
HW = H_OUT * W_OUT                   # 4 spatial positions
IN_FLAT = C_IN * H_IN * W_IN         # 48
H1_FLAT = HW * C1                    # 32
H2_FLAT = HW * C2                    # 64
N_ACT = 4
EPS = 1e-5


# ------------------------------ Pallas kernel --------------------------------
def _network_kernel(x_ref, w1_ref, s1_ref, w2_ref, s2_ref, wfc_ref, bfc_ref,
                    o_ref):
    wdt = w1_ref.dtype  # matmul operand dtype (f32 or bf16); accumulate in f32
    h1 = jnp.dot(x_ref[...], w1_ref[...], preferred_element_type=jnp.float32)
    h1 = jnp.maximum(h1 + s1_ref[...], 0.0)                    # f32 elementwise
    h2 = jnp.dot(h1.astype(wdt), w2_ref[...],
                 preferred_element_type=jnp.float32)
    h2 = jnp.maximum(h2 + s2_ref[...], 0.0)                    # f32 elementwise
    out = jnp.dot(h2.astype(wdt), wfc_ref[...],
                  preferred_element_type=jnp.float32)
    o_ref[...] = (out + bfc_ref[...]).astype(o_ref.dtype)


# --------------------------- host-side param folding -------------------------
def _fold_params(params, compute_dtype):
    (c1w, c1b, g1, b1, m1, v1,
     c2w, c2b, g2, b2, m2, v2,
     fcw, fcb) = params

    scale1 = g1 / jnp.sqrt(v1 + EPS)
    shift1 = scale1 * c1b + b1 - m1 * scale1
    scale2 = g2 / jnp.sqrt(v2 + EPS)
    shift2 = scale2 * c2b + b2 - m2 * scale2

    # conv1 zero-embedded as dense (48, 32); columns indexed hw*C1 + c1.
    w1_full = jnp.zeros((IN_FLAT, H1_FLAT), jnp.float32)
    ci = jnp.arange(C_IN)
    cc = jnp.arange(C1)
    for oh in range(H_OUT):
        for ow in range(W_OUT):
            hw = oh * W_OUT + ow
            for kh in range(K1):
                for kw in range(K1):
                    rows = ci * (H_IN * W_IN) + (oh + kh) * W_IN + (ow + kw)
                    cols = hw * C1 + cc
                    w1_full = w1_full.at[rows[:, None], cols[None, :]].set(
                        c1w[:, :, kh, kw].T)
    w1_eff = w1_full * jnp.tile(scale1, HW)[None, :]
    s1_eff = jnp.tile(shift1, HW).reshape(1, H1_FLAT)

    # conv2 (1x1) as block-diagonal (32, 64); BN2 folded into columns.
    w2 = c2w.reshape(C2, C1).T                                   # (8, 16)
    w2_full = jnp.kron(jnp.eye(HW, dtype=jnp.float32), w2)       # (32, 64)
    w2_eff = w2_full * jnp.tile(scale2, HW)[None, :]
    s2_eff = jnp.tile(shift2, HW).reshape(1, H2_FLAT)

    # fc weight permuted so row index = hw*C2 + c2 matches the kernel layout
    # (PyTorch flatten is (C,H,W) order: flat index = c2*HW + hw).
    wfc = jnp.transpose(fcw.reshape(N_ACT, C2, HW), (2, 1, 0)).reshape(
        H2_FLAT, N_ACT)
    bfc = fcb.reshape(1, N_ACT)

    return (w1_eff.astype(compute_dtype), s1_eff.astype(jnp.float32),
            w2_eff.astype(compute_dtype), s2_eff.astype(jnp.float32),
            wfc.astype(compute_dtype), bfc.astype(jnp.float32))


def _round_up(x, m):
    return (x + m - 1) // m * m


# ------------------------------ host wrapper ---------------------------------
def network_forward(x, params, *, block_b=512, compute_dtype=jnp.float32):
    """x: (B, 3, 4, 4) float32 NCHW  ->  (B, 4) float32."""
    B = x.shape[0]
    w1, s1, w2, s2, wfc, bfc = _fold_params(params, compute_dtype)

    # Stream x as (B, 48) rows (no im2col, no inflation of HBM traffic).
    x_flat = x.reshape(B, IN_FLAT).astype(compute_dtype)
    blk = min(block_b, _round_up(B, 8))          # row block, multiple of 8
    Bp = _round_up(B, blk)
    if Bp != B:
        x_flat = jnp.pad(x_flat, ((0, Bp - B), (0, 0)))

    def _wspec(a):
        return pl.BlockSpec(a.shape, lambda i: (0, 0))

    out = pl.pallas_call(
        _network_kernel,
        out_shape=jax.ShapeDtypeStruct((Bp, N_ACT), jnp.float32),
        grid=(Bp // blk,),
        in_specs=[pl.BlockSpec((blk, IN_FLAT), lambda i: (i, 0)),
                  _wspec(w1), _wspec(s1),
                  _wspec(w2), _wspec(s2),
                  _wspec(wfc), _wspec(bfc)],
        out_specs=pl.BlockSpec((blk, N_ACT), lambda i: (i, 0)),
        compiler_params=pltpu.CompilerParams(
            dimension_semantics=("parallel",),
            vmem_limit_bytes=32 * 1024 * 1024),
    )(x_flat, w1, s1, w2, s2, wfc, bfc)
    return out[:B]


# --------------------------- pure-JAX reference -------------------------------
def network_reference(x, params):
    (c1w, c1b, g1, b1, m1, v1,
     c2w, c2b, g2, b2, m2, v2,
     fcw, fcb) = params
    dn = ("NCHW", "OIHW", "NCHW")

    def bn(y, g, b, m, v):
        return (y - m.reshape(1, -1, 1, 1)) / jnp.sqrt(v + EPS).reshape(1, -1, 1, 1) \
            * g.reshape(1, -1, 1, 1) + b.reshape(1, -1, 1, 1)

    y = lax.conv_general_dilated(x, c1w, (1, 1), "VALID", dimension_numbers=dn)
    y = y + c1b.reshape(1, -1, 1, 1)
    y = jnp.maximum(bn(y, g1, b1, m1, v1), 0.0)
    y = lax.conv_general_dilated(y, c2w, (1, 1), "VALID", dimension_numbers=dn)
    y = y + c2b.reshape(1, -1, 1, 1)
    y = jnp.maximum(bn(y, g2, b2, m2, v2), 0.0)
    flat = y.reshape(x.shape[0], -1)                   # (B, 64), (C,H,W) order
    return flat @ fcw.T + fcb


# --------------------------------- params -------------------------------------
def make_params(key):
    ks = jax.random.split(key, 14)
    c1w = jax.random.normal(ks[0], (C1, C_IN, K1, K1), jnp.float32) * 0.1
    c1b = jax.random.normal(ks[1], (C1,), jnp.float32) * 0.1
    g1 = jax.random.uniform(ks[2], (C1,), jnp.float32, 0.5, 1.5)
    b1 = jax.random.normal(ks[3], (C1,), jnp.float32) * 0.1
    m1 = jax.random.normal(ks[4], (C1,), jnp.float32) * 0.1
    v1 = jax.random.uniform(ks[5], (C1,), jnp.float32, 0.5, 1.5)
    c2w = jax.random.normal(ks[6], (C2, C1, 1, 1), jnp.float32) * 0.1
    c2b = jax.random.normal(ks[7], (C2,), jnp.float32) * 0.1
    g2 = jax.random.uniform(ks[8], (C2,), jnp.float32, 0.5, 1.5)
    b2 = jax.random.normal(ks[9], (C2,), jnp.float32) * 0.1
    m2 = jax.random.normal(ks[10], (C2,), jnp.float32) * 0.1
    v2 = jax.random.uniform(ks[11], (C2,), jnp.float32, 0.5, 1.5)
    fcw = jax.random.normal(ks[12], (N_ACT, H2_FLAT), jnp.float32) * 0.1
    fcb = jax.random.normal(ks[13], (N_ACT,), jnp.float32) * 0.1
    return (c1w, c1b, g1, b1, m1, v1, c2w, c2b, g2, b2, m2, v2, fcw, fcb)


# --------------------------------- main ---------------------------------------
if __name__ == "__main__":
    key = jax.random.PRNGKey(0)
    k_x, k_p, k_x2 = jax.random.split(key, 3)
    params = make_params(k_p)

    # Small batch (module's nominal shape), f32 operands.
    B = 2
    x = jax.random.normal(k_x, (B, C_IN, H_IN, W_IN), jnp.float32)
    out = jax.block_until_ready(network_forward(x, params))
    ref = jax.block_until_ready(network_reference(x, params))
    assert out.shape == (B, N_ACT), out.shape
    assert jnp.allclose(out, ref, atol=1e-4, rtol=1e-4), (out, ref)

    # Larger, non-multiple-of-8 batch: exercises padding + the batch grid
    # (block_b=16 -> 3 pipelined grid steps).
    B2 = 40
    x2 = jax.random.normal(k_x2, (B2, C_IN, H_IN, W_IN), jnp.float32)
    out2 = jax.block_until_ready(network_forward(x2, params, block_b=16))
    ref2 = jax.block_until_ready(network_reference(x2, params))
    assert out2.shape == (B2, N_ACT), out2.shape
    assert jnp.allclose(out2, ref2, atol=1e-4, rtol=1e-4), (out2, ref2)

    # bf16-operand path (v6e/v7x MXU native dtype); shift+ReLU stay f32.
    out_bf16 = jax.block_until_ready(
        network_forward(x2, params, block_b=16, compute_dtype=jnp.bfloat16))
    assert jnp.allclose(out_bf16, ref2, atol=5e-2, rtol=5e-2), (out_bf16, ref2)

    print("KERNEL_OK")
</pallas_src>

<mosaic_0001>
module attributes {stable_mosaic.version = 11 : i64} {
  func.func @_network_kernel(%arg0: i32, %arg1: memref<8x48xf32, #tpu.memory_space<vmem>>, %arg2: memref<48x32xf32, #tpu.memory_space<vmem>>, %arg3: memref<1x32xf32, #tpu.memory_space<vmem>>, %arg4: memref<32x64xf32, #tpu.memory_space<vmem>>, %arg5: memref<1x64xf32, #tpu.memory_space<vmem>>, %arg6: memref<64x4xf32, #tpu.memory_space<vmem>>, %arg7: memref<1x4xf32, #tpu.memory_space<vmem>>, %arg8: memref<8x4xf32, #tpu.memory_space<vmem>>) attributes {dimension_semantics = [#tpu.dimension_semantics<parallel>], iteration_bounds = array<i64: 1>, scalar_prefetch = 0 : i64, scratch_operands = 0 : i64, tpu.core_type = #tpu.core_type<tc>, window_params = [{transform_indices = @transform_0, window_bounds = array<i64: 8, 48>}, {pipeline_mode = #tpu.pipeline_mode<synchronous>, transform_indices = @transform_1, window_bounds = array<i64: 48, 32>}, {pipeline_mode = #tpu.pipeline_mode<synchronous>, transform_indices = @transform_2, window_bounds = array<i64: 1, 32>}, {pipeline_mode = #tpu.pipeline_mode<synchronous>, transform_indices = @transform_3, window_bounds = array<i64: 32, 64>}, {pipeline_mode = #tpu.pipeline_mode<synchronous>, transform_indices = @transform_4, window_bounds = array<i64: 1, 64>}, {pipeline_mode = #tpu.pipeline_mode<synchronous>, transform_indices = @transform_5, window_bounds = array<i64: 64, 4>}, {pipeline_mode = #tpu.pipeline_mode<synchronous>, transform_indices = @transform_6, window_bounds = array<i64: 1, 4>}, {transform_indices = @transform_7, window_bounds = array<i64: 8, 4>}]} {
    %c0 = arith.constant 0 : index
    %c0_0 = arith.constant 0 : index
    %0 = vector.load %arg1[%c0, %c0_0] : memref<8x48xf32, #tpu.memory_space<vmem>>, vector<8x48xf32>
    %c0_1 = arith.constant 0 : index
    %c0_2 = arith.constant 0 : index
    %1 = vector.load %arg2[%c0_1, %c0_2] : memref<48x32xf32, #tpu.memory_space<vmem>>, vector<48x32xf32>
    %cst = arith.constant dense<0.000000e+00> : vector<8x32xf32>
    %2 = tpu.matmul %0, %1, %cst {dimension_numbers = #tpu.dot_dimension_numbers<[1], [0], [0], [1], [0, 0, 1, 1], [], []>} : vector<8x48xf32>, vector<48x32xf32>, vector<8x32xf32> -> vector<8x32xf32>
    %c0_3 = arith.constant 0 : index
    %c0_4 = arith.constant 0 : index
    %3 = vector.load %arg3[%c0_3, %c0_4] : memref<1x32xf32, #tpu.memory_space<vmem>>, vector<1x32xf32>
    %4 = vector.broadcast %3 : vector<1x32xf32> to vector<8x32xf32>
    %5 = arith.addf %2, %4 : vector<8x32xf32>
    %cst_5 = arith.constant 0.000000e+00 : f32
    %6 = vector.broadcast %cst_5 : f32 to vector<8x32xf32>
    %7 = arith.maximumf %5, %6 : vector<8x32xf32>
    %c0_6 = arith.constant 0 : index
    %c0_7 = arith.constant 0 : index
    %8 = vector.load %arg4[%c0_6, %c0_7] : memref<32x64xf32, #tpu.memory_space<vmem>>, vector<32x64xf32>
    %cst_8 = arith.constant dense<0.000000e+00> : vector<8x64xf32>
    %9 = tpu.matmul %7, %8, %cst_8 {dimension_numbers = #tpu.dot_dimension_numbers<[1], [0], [0], [1], [0, 0, 1, 1], [], []>} : vector<8x32xf32>, vector<32x64xf32>, vector<8x64xf32> -> vector<8x64xf32>
    %c0_9 = arith.constant 0 : index
    %c0_10 = arith.constant 0 : index
    %10 = vector.load %arg5[%c0_9, %c0_10] : memref<1x64xf32, #tpu.memory_space<vmem>>, vector<1x64xf32>
    %11 = vector.broadcast %10 : vector<1x64xf32> to vector<8x64xf32>
    %12 = arith.addf %9, %11 : vector<8x64xf32>
    %cst_11 = arith.constant 0.000000e+00 : f32
    %13 = vector.broadcast %cst_11 : f32 to vector<8x64xf32>
    %14 = arith.maximumf %12, %13 : vector<8x64xf32>
    %c0_12 = arith.constant 0 : index
    %c0_13 = arith.constant 0 : index
    %15 = vector.load %arg6[%c0_12, %c0_13] : memref<64x4xf32, #tpu.memory_space<vmem>>, vector<64x4xf32>
    %cst_14 = arith.constant dense<0.000000e+00> : vector<8x4xf32>
    %16 = tpu.matmul %14, %15, %cst_14 {dimension_numbers = #tpu.dot_dimension_numbers<[1], [0], [0], [1], [0, 0, 1, 1], [], []>} : vector<8x64xf32>, vector<64x4xf32>, vector<8x4xf32> -> vector<8x4xf32>
    %c0_15 = arith.constant 0 : index
    %c0_16 = arith.constant 0 : index
    %17 = vector.load %arg7[%c0_15, %c0_16] : memref<1x4xf32, #tpu.memory_space<vmem>>, vector<1x4xf32>
    %18 = vector.broadcast %17 : vector<1x4xf32> to vector<8x4xf32>
    %19 = arith.addf %16, %18 : vector<8x4xf32>
    %c0_17 = arith.constant 0 : index
    %c0_18 = arith.constant 0 : index
    %20 = vector.load %arg8[%c0_17, %c0_18] : memref<8x4xf32, #tpu.memory_space<vmem>>, vector<8x4xf32>
    tpu.vector_store %arg8[%c0_17, %c0_18], %19 {strides = array<i32>} : memref<8x4xf32, #tpu.memory_space<vmem>>, vector<8x4xf32>,
    return
  }
  func.func @transform_0(%arg0: i32) -> (i32, i32) {
    %c0_i32 = arith.constant 0 : i32
    %c0_i32_0 = arith.constant 0 : i32
    return %arg0, %c0_i32 : i32, i32
  }
  func.func @transform_1(%arg0: i32) -> (i32, i32) {
    %c0_i32 = arith.constant 0 : i32
    %c0_i32_0 = arith.constant 0 : i32
    %c0_i32_1 = arith.constant 0 : i32
    return %c0_i32, %c0_i32_0 : i32, i32
  }
  func.func @transform_2(%arg0: i32) -> (i32, i32) {
    %c0_i32 = arith.constant 0 : i32
    %c0_i32_0 = arith.constant 0 : i32
    %c0_i32_1 = arith.constant 0 : i32
    return %c0_i32, %c0_i32_0 : i32, i32
  }
  func.func @transform_3(%arg0: i32) -> (i32, i32) {
    %c0_i32 = arith.constant 0 : i32
    %c0_i32_0 = arith.constant 0 : i32
    %c0_i32_1 = arith.constant 0 : i32
    return %c0_i32, %c0_i32_0 : i32, i32
  }
  func.func @transform_4(%arg0: i32) -> (i32, i32) {
    %c0_i32 = arith.constant 0 : i32
    %c0_i32_0 = arith.constant 0 : i32
    %c0_i32_1 = arith.constant 0 : i32
    return %c0_i32, %c0_i32_0 : i32, i32
  }
  func.func @transform_5(%arg0: i32) -> (i32, i32) {
    %c0_i32 = arith.constant 0 : i32
    %c0_i32_0 = arith.constant 0 : i32
    %c0_i32_1 = arith.constant 0 : i32
    return %c0_i32, %c0_i32_0 : i32, i32
  }
  func.func @transform_6(%arg0: i32) -> (i32, i32) {
    %c0_i32 = arith.constant 0 : i32
    %c0_i32_0 = arith.constant 0 : i32
    %c0_i32_1 = arith.constant 0 : i32
    return %c0_i32, %c0_i32_0 : i32, i32
  }
  func.func @transform_7(%arg0: i32) -> (i32, i32) {
    %c0_i32 = arith.constant 0 : i32
    %c0_i32_0 = arith.constant 0 : i32
    return %arg0, %c0_i32 : i32, i32
  }
}

</mosaic_0001>

<llo_original>
// kernel: tpu_custom_call.1
$region0: #{tpu_custom_call.1}
  #allocation0 [shape = 'u32[]', space=smem, size = 0x4, offset = 0x4, fixed_abs, tag = 'smem constant byte address 0x4 - core index']
  #allocation1 [shape = 'u32[72,128]{1,0:T(1,128)}', space=vmem, size = 0x9000, scoped, tag = 'internal scratch']
  %s0 = inlined_call_operand.vmem [shape: f32[8,48], index: 0, kind: input, shape index: {}]
  %s1 = inlined_call_operand.vmem [shape: f32[48,32], index: 1, kind: input, shape index: {}]
  %s2 = inlined_call_operand.vmem [shape: f32[1,32], index: 2, kind: input, shape index: {}]
  %s3 = inlined_call_operand.vmem [shape: f32[32,64], index: 3, kind: input, shape index: {}]
  %s4 = inlined_call_operand.vmem [shape: f32[1,64], index: 4, kind: input, shape index: {}]
  %s5 = inlined_call_operand.vmem [shape: f32[64,4], index: 5, kind: input, shape index: {}]
  %s6 = inlined_call_operand.vmem [shape: f32[1,4], index: 6, kind: input, shape index: {}]
  %s7 = inlined_call_operand.vmem [shape: f32[8,4], index: 7, kind: output, shape index: {}]
  %s8 = sld [smem:[#allocation0]]
  $region38: #{tpu_custom_call.1} parent=0
    _
  %s10 = ssub.s32 1, %s8
  %s11 = scalar_select 0, %s10, %s8
  // Predicated region
  $region2: #{tpu_custom_call.1} parent=0 // pred_check
    _
  $region3: #{tpu_custom_call.1} parent=0 // pred_check_branch
    %13 = sbr.rel (0) target = $region5
  $region4: #{tpu_custom_call.1} parent=0 // pred_region
    _
  $region5: #{tpu_custom_call.1} parent=0 // pred_fallthru
    _
  // Predicated region
  $region6: #{tpu_custom_call.1} parent=0 // pred_check
    _
  $region7: #{tpu_custom_call.1} parent=0 // pred_check_branch
    %15 = sbr.rel (0) target = $region9
  $region8: #{tpu_custom_call.1} parent=0 // pred_region
    _
  $region9: #{tpu_custom_call.1} parent=0 // pred_fallthru
    _
  // Predicated region
  $region10: #{tpu_custom_call.1} parent=0 // pred_check
    _
  $region11: #{tpu_custom_call.1} parent=0 // pred_check_branch
    %17 = sbr.rel (0) target = $region13
  $region12: #{tpu_custom_call.1} parent=0 // pred_region
    _
  $region13: #{tpu_custom_call.1} parent=0 // pred_fallthru
    _
  // Predicated region
  $region14: #{tpu_custom_call.1} parent=0 // pred_check
    _
  $region15: #{tpu_custom_call.1} parent=0 // pred_check_branch
    %19 = sbr.rel (0) target = $region17
  $region16: #{tpu_custom_call.1} parent=0 // pred_region
    _
  $region17: #{tpu_custom_call.1} parent=0 // pred_fallthru
    _
  // Predicated region
  $region18: #{tpu_custom_call.1} parent=0 // pred_check
    _
  $region19: #{tpu_custom_call.1} parent=0 // pred_check_branch
    %21 = sbr.rel (0) target = $region21
  $region20: #{tpu_custom_call.1} parent=0 // pred_region
    _
  $region21: #{tpu_custom_call.1} parent=0 // pred_fallthru
    _
  // Predicated region
  $region22: #{tpu_custom_call.1} parent=0 // pred_check
    _
  $region23: #{tpu_custom_call.1} parent=0 // pred_check_branch
    %23 = sbr.rel (0) target = $region25
  $region24: #{tpu_custom_call.1} parent=0 // pred_region
    _
  $region25: #{tpu_custom_call.1} parent=0 // pred_fallthru
    _
  // Predicated region
  $region26: #{tpu_custom_call.1} parent=0 // pred_check
    _
  $region27: #{tpu_custom_call.1} parent=0 // pred_check_branch
    %25 = sbr.rel (0) target = $region29
  $region28: #{tpu_custom_call.1} parent=0 // pred_region
    _
  $region29: #{tpu_custom_call.1} parent=0 // pred_fallthru
    _
  %v26 = vld [vmem:[%s0] sm:$0xff]
  %v27 = vld [vmem:[%s1] sm:$0xff]
  %v28 = vld [vmem:[%s1 + $0x8] sm:$0xff]
  %v29 = vld [vmem:[%s1 + $0x10] sm:$0xff]
  %v30 = vld [vmem:[%s1 + $0x18] sm:$0xff]
  %v31 = vld [vmem:[%s1 + $0x20] sm:$0xff]
  %v32 = vld [vmem:[%s1 + $0x28] sm:$0xff]
  %v33 = vld [vmem:[%s2] sm:$0x1]
  %v35 = vperm.slane %v33, 0
  %vm37 = vcmask 392192
  %v39 = vsel %vm37, %v26, 0
  %41 = vmatpush.msra.mxu0 0.0
  %42 = vmatpush.msra.mxu0 0.0
  %43 = vmatpush.msra.mxu0 0.0
  %44 = vmatpush.msra.mxu0 0.0
  %45 = vmatpush.msra.mxu0 0.0
  %46 = vmatpush.msra.mxu0 0.0
  %47 = vmatpush.msra.mxu0 0.0
  %48 = vmatpush.msra.mxu0 0.0
  %49 = vmatpush.msra.mxu0 0.0
  %50 = vmatpush.msra.mxu0 0.0
  %51 = vmatpush.msra.mxu0 %v32
  %52 = vmatpush.msra.mxu0 %v31
  %53 = vmatpush.msra.mxu0 %v30
  %54 = vmatpush.msra.mxu0 %v29
  %55 = vmatpush.msra.mxu0 %v28
  %56 = vmatpush.msra.mxu0 %v27
  %57 = vmatmul.f32.gmra.mxu0 %v39
  %v58 = vpop.f32.mrf.mxu0
  %v59 = vadd.f32 %v35, %v58
  %60 = vdwg.mxu0
  %v61 = vmax.f32 %v59, 0.0
  %v62 = vld [vmem:[%s3] sm:$0xff]
  %v63 = vld [vmem:[%s3 + $0x8] sm:$0xff]
  %v64 = vld [vmem:[%s3 + $0x10] sm:$0xff]
  %v65 = vld [vmem:[%s3 + $0x18] sm:$0xff]
  %v66 = vld [vmem:[%s4] sm:$0x1]
  %v68 = vperm.slane %v66, 0
  %vm70 = vcmask 261120
  %v72 = vsel %vm70, %v61, 0
  %74 = vmatpush.msra.mxu0 0.0
  %75 = vmatpush.msra.mxu0 0.0
  %76 = vmatpush.msra.mxu0 0.0
  %77 = vmatpush.msra.mxu0 0.0
  %78 = vmatpush.msra.mxu0 0.0
  %79 = vmatpush.msra.mxu0 0.0
  %80 = vmatpush.msra.mxu0 0.0
  %81 = vmatpush.msra.mxu0 0.0
  %82 = vmatpush.msra.mxu0 0.0
  %83 = vmatpush.msra.mxu0 0.0
  %84 = vmatpush.msra.mxu0 0.0
  %85 = vmatpush.msra.mxu0 0.0
  %86 = vmatpush.msra.mxu0 %v65
  %87 = vmatpush.msra.mxu0 %v64
  %88 = vmatpush.msra.mxu0 %v63
  %89 = vmatpush.msra.mxu0 %v62
  %90 = vmatmul.f32.gmra.mxu0 %v72
  %v91 = vpop.f32.mrf.mxu0
  %v92 = vadd.f32 %v68, %v91
  %93 = vdwg.mxu0
  %v94 = vmax.f32 %v92, 0.0
  %v95 = vld [vmem:[%s5] sm:$0xff]
  %v96 = vld [vmem:[%s5 + $0x8] sm:$0xff]
  %v97 = vld [vmem:[%s5 + $0x10] sm:$0xff]
  %v98 = vld [vmem:[%s5 + $0x18] sm:$0xff]
  %v99 = vld [vmem:[%s5 + $0x20] sm:$0xff]
  %v100 = vld [vmem:[%s5 + $0x28] sm:$0xff]
  %v101 = vld [vmem:[%s5 + $0x30] sm:$0xff]
  %v102 = vld [vmem:[%s5 + $0x38] sm:$0xff]
  %v103 = vld [vmem:[%s6] sm:$0x1]
  %v105 = vperm.slane %v103, 0
  %vm107 = vcmask 523264
  %v109 = vsel %vm107, %v94, 0
  %111 = vmatpush.msra.mxu0 0.0
  %112 = vmatpush.msra.mxu0 0.0
  %113 = vmatpush.msra.mxu0 0.0
  %114 = vmatpush.msra.mxu0 0.0
  %115 = vmatpush.msra.mxu0 0.0
  %116 = vmatpush.msra.mxu0 0.0
  %117 = vmatpush.msra.mxu0 0.0
  %118 = vmatpush.msra.mxu0 0.0
  %119 = vmatpush.msra.mxu0 %v102
  %120 = vmatpush.msra.mxu0 %v101
  %121 = vmatpush.msra.mxu0 %v100
  %122 = vmatpush.msra.mxu0 %v99
  %123 = vmatpush.msra.mxu0 %v98
  %124 = vmatpush.msra.mxu0 %v97
  %125 = vmatpush.msra.mxu0 %v96
  %126 = vmatpush.msra.mxu0 %v95
  %127 = vmatmul.f32.gmra.mxu0 %v109
  %v128 = vpop.f32.mrf.mxu0
  %v129 = vadd.f32 %v105, %v128
  %130 = vdwg.mxu0
  %vm131 = vcmask 31744
  %132 = vst.msk [vmem:[%s7] sm:$0xff] %vm131, %v129
  // Predicated region
  $region30: #{tpu_custom_call.1} parent=0 // pred_check
    _
  $region31: #{tpu_custom_call.1} parent=0 // pred_check_branch
    %134 = sbr.rel (0) target = $region33
  $region32: #{tpu_custom_call.1} parent=0 // pred_region
    _
  $region33: #{tpu_custom_call.1} parent=0 // pred_fallthru
    _
  // Predicated region
  $region34: #{tpu_custom_call.1} parent=0 // pred_check
    _
  $region35: #{tpu_custom_call.1} parent=0 // pred_check_branch
    %136 = sbr.rel (0) target = $region37
  $region36: #{tpu_custom_call.1} parent=0 // pred_region
    _
  $region37: #{tpu_custom_call.1} parent=0 // pred_fallthru
    _

</llo_original>
